<compile_context>
chip_gen: v5e
topology: v5e:2x2
jax: 0.10.0
libtpu: 0.0.40
codegen_flags: <defaults>
</compile_context>

<pallas_src>
import jax
import jax.numpy as jnp
from jax import lax
from jax.experimental import pallas as pl
from jax.experimental.pallas import tpu as pltpu


def se_basic_block_kernel(x_ref, wb1_ref, b1_ref, wb2_ref, b2_ref,
                          wf1_ref, wf2_ref, out_ref):
    # x_ref / out_ref : (N, H, W*C)  lane-dense activation rows, f32
    # wb1/wb2         : (3*W*C, W*C) bf16 fused 3x3 conv matrices, BN scale folded in
    # b1/b2           : (1, W*C)     f32 folded BN bias, tiled over W
    # wf1             : (W*C, 128)   bf16 SE fc1, mean-over-W folded in, Cr zero-padded
    # wf2             : (128, W*C)   bf16 SE fc2, channel->lane broadcast folded in
    N, H, WC = x_ref.shape

    x3 = x_ref[...]                       # (N, H, WC)
    x2 = x3.reshape(N * H, WC)            # major-dim merge: free

    # H-direction zero-padding masks (built once, reused by both convs).
    h_iota = lax.broadcasted_iota(jnp.int32, (H, 1), 0)
    first_row = h_iota == 0
    last_row = h_iota == (H - 1)

    def conv3x3(v2, wb):
        # v2: (N*H, WC) f32.  Per image: build the three H-shifted slabs with
        # XLU sublane rolls + VPU masks (no (H+2) padded materialization, no
        # sublane-unaligned slices), lane-aligned concat (each slab = WC
        # lanes), then ONE bf16 MXU matmul against the fused block-banded
        # weight matrix (W taps + W zero padding + BN scale all folded in).
        rows = []
        for n in range(N):                               # static; n*H is a multiple of 8
            vn = v2[n * H:(n + 1) * H]                   # (H, WC) sublane-aligned slice
            up = jnp.where(first_row, 0.0, pltpu.roll(vn, 1, axis=0))      # row h-1
            dn = jnp.where(last_row, 0.0, pltpu.roll(vn, H - 1, axis=0))   # row h+1
            rows.append(jnp.concatenate([up, vn, dn], axis=-1))            # (H, 3*WC)
        slabs = jnp.concatenate(rows, axis=0)            # (N*H, 3*WC)
        return jnp.dot(slabs.astype(jnp.bfloat16), wb,
                       preferred_element_type=jnp.float32)                 # (N*H, WC) f32

    # ---- conv1 -> BN1 (scale folded into wb1, bias here) -> ReLU ----
    y1 = jnp.maximum(conv3x3(x2, wb1_ref[...]) + b1_ref[...], 0.0)

    # ---- conv2 -> BN2 (scale folded into wb2, bias here) ----
    y2 = conv3x3(y1, wb2_ref[...]) + b2_ref[...]         # (N*H, WC)
    y2_3 = y2.reshape(N, H, WC)

    # ---- SE: avg pool (mean over H here; mean over W folded into wf1)
    #      -> fc1 -> ReLU -> fc2 -> sigmoid ----
    pooled = jnp.mean(y2_3, axis=1)                      # (N, WC)
    z = jnp.maximum(jnp.dot(pooled.astype(jnp.bfloat16), wf1_ref[...],
                            preferred_element_type=jnp.float32), 0.0)      # (N, 128)
    gate = jax.nn.sigmoid(jnp.dot(z.astype(jnp.bfloat16), wf2_ref[...],
                                  preferred_element_type=jnp.float32))     # (N, WC)

    # ---- channel rescale + residual add + final ReLU ----
    out_ref[...] = jnp.maximum(y2_3 * gate[:, None, :] + x3, 0.0)


def _conv_row_matrix(w_hwio, W, C):
    """(3, 3, Cin, Cout) HWIO weights -> (3*W*C, W*C) fused conv matrix (f32).

    Row block dh (size W*C) multiplies the input row shifted by dh-1 in H;
    within it, output position wo gets contributions from input position
    wi = wo + dw - 1 (W zero-padding handled by clipping the band)."""
    blocks = []
    for dh in range(3):
        m = jnp.zeros((W * C, W * C), jnp.float32)
        for dw in range(3):
            off = dw - 1                                       # input w = output w + off
            sel = jnp.eye(W, W, k=-off, dtype=jnp.float32)     # sel[wi, wo]=1 iff wi=wo+off
            m = m + jnp.kron(sel, w_hwio[dh, dw].astype(jnp.float32))
        blocks.append(m)
    return jnp.concatenate(blocks, axis=0)                     # (3*W*C, W*C)


def prepare_params(params, H, W, C, cr_pad=128):
    """One-time (init) weight preparation.  Nothing here runs per forward."""
    WC = W * C
    Cr = params["w_fc1"].shape[1]

    s1t = jnp.tile(params["s1"], (1, W))                       # (1, WC)
    s2t = jnp.tile(params["s2"], (1, W))
    b1t = jnp.tile(params["b1"], (1, W))
    b2t = jnp.tile(params["b2"], (1, W))

    # Fused conv matrices with BN scale folded into the output columns; bf16.
    wb1 = (_conv_row_matrix(params["w1"], W, C) * s1t).astype(jnp.bfloat16)
    wb2 = (_conv_row_matrix(params["w2"], W, C) * s2t).astype(jnp.bfloat16)

    # SE FCs: fold mean-over-W into fc1, channel->lane replication into fc2,
    # zero-pad the tiny Cr dimension to a full 128-lane width; bf16.
    eye_c = jnp.eye(C, dtype=jnp.float32)
    wf1_eff = (jnp.tile(eye_c, (W, 1)) / W) @ params["w_fc1"]  # (WC, Cr)
    wf2_eff = params["w_fc2"] @ jnp.tile(eye_c, (1, W))        # (Cr, WC)
    wf1 = jnp.zeros((WC, cr_pad), jnp.float32).at[:, :Cr].set(wf1_eff).astype(jnp.bfloat16)
    wf2 = jnp.zeros((cr_pad, WC), jnp.float32).at[:Cr, :].set(wf2_eff).astype(jnp.bfloat16)

    return dict(wb1=wb1, b1=b1t, wb2=wb2, b2=b2t, wf1=wf1, wf2=wf2)


def se_basic_block(x_nhwc, prep):
    """Fused SEBasicBlock forward. x_nhwc: (N, H, W, C) float32."""
    N, H, W, C = x_nhwc.shape
    WC = W * C
    assert H % 8 == 0 and WC % 128 == 0, "layout assumes 8-sublane / 128-lane alignment"

    x_rows = x_nhwc.reshape(N, H, WC)                          # lane-dense rows (free reshape)

    vmem = pl.BlockSpec(memory_space=pltpu.MemorySpace.VMEM)
    out_rows = pl.pallas_call(
        se_basic_block_kernel,
        out_shape=jax.ShapeDtypeStruct((N, H, WC), jnp.float32),
        in_specs=[vmem] * 7,
        out_specs=vmem,
    )(x_rows, prep["wb1"], prep["b1"], prep["wb2"], prep["b2"],
      prep["wf1"], prep["wf2"])

    return out_rows.reshape(N, H, W, C)


def ref_forward(x_nhwc, params):
    """Pure-JAX reference (same semantics as the PyTorch forward, eval BN)."""
    dn = ("NHWC", "HWIO", "NHWC")
    hi = lax.Precision.HIGHEST
    y = lax.conv_general_dilated(x_nhwc, params["w1"], (1, 1), [(1, 1), (1, 1)],
                                 dimension_numbers=dn, precision=hi)
    y = jnp.maximum(y * params["s1"] + params["b1"], 0.0)
    y = lax.conv_general_dilated(y, params["w2"], (1, 1), [(1, 1), (1, 1)],
                                 dimension_numbers=dn, precision=hi)
    y = y * params["s2"] + params["b2"]
    s = jnp.mean(y, axis=(1, 2))                               # (N, C)
    z = jnp.maximum(jnp.dot(s, params["w_fc1"], precision=hi), 0.0)
    a = jax.nn.sigmoid(jnp.dot(z, params["w_fc2"], precision=hi))
    y = y * a[:, None, None, :]
    return jnp.maximum(y + x_nhwc, 0.0)


def make_params(key, C, reduction):
    Cr = C // reduction
    ks = jax.random.split(key, 12)
    eps = 1e-5

    w1 = 0.1 * jax.random.normal(ks[0], (3, 3, C, C), jnp.float32)
    w2 = 0.1 * jax.random.normal(ks[1], (3, 3, C, C), jnp.float32)

    def folded_bn(kg, kb, km, kv):
        gamma = 1.0 + 0.1 * jax.random.normal(kg, (C,), jnp.float32)
        beta = 0.1 * jax.random.normal(kb, (C,), jnp.float32)
        mean = 0.1 * jax.random.normal(km, (C,), jnp.float32)
        var = jnp.abs(jax.random.normal(kv, (C,), jnp.float32)) + 0.5
        scale = gamma / jnp.sqrt(var + eps)
        bias = beta - mean * scale
        return scale.reshape(1, C), bias.reshape(1, C)

    s1, b1 = folded_bn(ks[2], ks[3], ks[4], ks[5])
    s2, b2 = folded_bn(ks[6], ks[7], ks[8], ks[9])

    w_fc1 = 0.3 * jax.random.normal(ks[10], (C, Cr), jnp.float32)
    w_fc2 = 0.3 * jax.random.normal(ks[11], (Cr, C), jnp.float32)

    return dict(w1=w1, w2=w2, s1=s1, b1=b1, s2=s2, b2=b2,
                w_fc1=w_fc1, w_fc2=w_fc2)


if __name__ == "__main__":
    # Shapes consistent with SEBasicBlock(in_chans=16, out_chans=16, stride=1,
    # reduction=4): input NCHW (2, 16, 8, 8); W*C = 128 (lane-dense).
    N, C, H, W = 2, 16, 8, 8
    reduction = 4

    key = jax.random.PRNGKey(0)
    kx, kp = jax.random.split(key)
    x_nchw = jax.random.normal(kx, (N, C, H, W), jnp.float32)
    params = make_params(kp, C, reduction)

    # One-time weight prep (hoisted out of the forward path).
    prep = jax.tree_util.tree_map(jax.block_until_ready,
                                  prepare_params(params, H, W, C))

    # NCHW -> NHWC for the TPU kernel.
    x_nhwc = jnp.transpose(x_nchw, (0, 2, 3, 1))

    fwd = jax.jit(se_basic_block)
    out = jax.block_until_ready(fwd(x_nhwc, prep))
    ref = jax.block_until_ready(ref_forward(x_nhwc, params))

    assert out.shape == (N, H, W, C)
    err = float(jnp.max(jnp.abs(out - ref)))
    # bf16 MXU operands (f32 accumulation) -> relaxed tolerance vs. f32 ref.
    assert jnp.allclose(out, ref, atol=5e-2, rtol=5e-2), f"max abs err {err}"

    print("KERNEL_OK")
</pallas_src>

<mosaic_0001>
module attributes {stable_mosaic.version = 11 : i64} {
  func.func @se_basic_block_kernel(%arg0: memref<2x8x128xf32, #tpu.memory_space<vmem>>, %arg1: memref<384x128xbf16, #tpu.memory_space<vmem>>, %arg2: memref<1x128xf32, #tpu.memory_space<vmem>>, %arg3: memref<384x128xbf16, #tpu.memory_space<vmem>>, %arg4: memref<1x128xf32, #tpu.memory_space<vmem>>, %arg5: memref<128x128xbf16, #tpu.memory_space<vmem>>, %arg6: memref<128x128xbf16, #tpu.memory_space<vmem>>, %arg7: memref<2x8x128xf32, #tpu.memory_space<vmem>>) attributes {dimension_semantics = [], scalar_prefetch = 0 : i64, scratch_operands = 0 : i64, tpu.core_type = #tpu.core_type<tc>} {
    %c0 = arith.constant 0 : index
    %c0_0 = arith.constant 0 : index
    %c0_1 = arith.constant 0 : index
    %0 = vector.load %arg0[%c0, %c0_0, %c0_1] : memref<2x8x128xf32, #tpu.memory_space<vmem>>, vector<2x8x128xf32>
    %1 = vector.shape_cast %0 : vector<2x8x128xf32> to vector<16x128xf32>
    %2 = tpu.iota {dimensions = array<i32: 0>} : vector<8x1xi32>
    %c0_i32 = arith.constant 0 : i32
    %3 = vector.broadcast %c0_i32 : i32 to vector<8x1xi32>
    %4 = arith.cmpi eq, %2, %3 : vector<8x1xi32>
    %c7_i32 = arith.constant 7 : i32
    %5 = vector.broadcast %c7_i32 : i32 to vector<8x1xi32>
    %6 = arith.cmpi eq, %2, %5 : vector<8x1xi32>
    %c0_2 = arith.constant 0 : index
    %c0_3 = arith.constant 0 : index
    %7 = vector.load %arg1[%c0_2, %c0_3] : memref<384x128xbf16, #tpu.memory_space<vmem>>, vector<384x128xbf16>
    %8 = vector.extract_strided_slice %1 {offsets = [0, 0], sizes = [8, 128], strides = [1, 1]} : vector<16x128xf32> to vector<8x128xf32>
    %c1_i32 = arith.constant 1 : i32
    %9 = tpu.dynamic_rotate %8 by %c1_i32 dim 0 : vector<8x128xf32>, i32 -> vector<8x128xf32>
    %cst = arith.constant 0.000000e+00 : f32
    %10 = vector.shape_cast %4 : vector<8x1xi1> to vector<8x1xi1>
    %11 = vector.broadcast %10 : vector<8x1xi1> to vector<8x128xi1>
    %12 = vector.broadcast %cst : f32 to vector<8x128xf32>
    %13 = arith.select %11, %12, %9 : vector<8x128xi1>, vector<8x128xf32>
    %c7_i32_4 = arith.constant 7 : i32
    %14 = tpu.dynamic_rotate %8 by %c7_i32_4 dim 0 : vector<8x128xf32>, i32 -> vector<8x128xf32>
    %cst_5 = arith.constant 0.000000e+00 : f32
    %15 = vector.shape_cast %6 : vector<8x1xi1> to vector<8x1xi1>
    %16 = vector.broadcast %15 : vector<8x1xi1> to vector<8x128xi1>
    %17 = vector.broadcast %cst_5 : f32 to vector<8x128xf32>
    %18 = arith.select %16, %17, %14 : vector<8x128xi1>, vector<8x128xf32>
    %19 = tpu.concatenate %13, %8, %18 in 1 : vector<8x128xf32>, vector<8x128xf32>, vector<8x128xf32> -> vector<8x384xf32>
    %20 = vector.extract_strided_slice %1 {offsets = [8, 0], sizes = [8, 128], strides = [1, 1]} : vector<16x128xf32> to vector<8x128xf32>
    %c1_i32_6 = arith.constant 1 : i32
    %21 = tpu.dynamic_rotate %20 by %c1_i32_6 dim 0 : vector<8x128xf32>, i32 -> vector<8x128xf32>
    %cst_7 = arith.constant 0.000000e+00 : f32
    %22 = vector.shape_cast %4 : vector<8x1xi1> to vector<8x1xi1>
    %23 = vector.broadcast %22 : vector<8x1xi1> to vector<8x128xi1>
    %24 = vector.broadcast %cst_7 : f32 to vector<8x128xf32>
    %25 = arith.select %23, %24, %21 : vector<8x128xi1>, vector<8x128xf32>
    %c7_i32_8 = arith.constant 7 : i32
    %26 = tpu.dynamic_rotate %20 by %c7_i32_8 dim 0 : vector<8x128xf32>, i32 -> vector<8x128xf32>
    %cst_9 = arith.constant 0.000000e+00 : f32
    %27 = vector.shape_cast %6 : vector<8x1xi1> to vector<8x1xi1>
    %28 = vector.broadcast %27 : vector<8x1xi1> to vector<8x128xi1>
    %29 = vector.broadcast %cst_9 : f32 to vector<8x128xf32>
    %30 = arith.select %28, %29, %26 : vector<8x128xi1>, vector<8x128xf32>
    %31 = tpu.concatenate %25, %20, %30 in 1 : vector<8x128xf32>, vector<8x128xf32>, vector<8x128xf32> -> vector<8x384xf32>
    %32 = tpu.concatenate %19, %31 in 0 : vector<8x384xf32>, vector<8x384xf32> -> vector<16x384xf32>
    %33 = arith.truncf %32 : vector<16x384xf32> to vector<16x384xbf16>
    %cst_10 = arith.constant dense<0.000000e+00> : vector<16x128xf32>
    %34 = tpu.matmul %33, %7, %cst_10 {dimension_numbers = #tpu.dot_dimension_numbers<[1], [0], [0], [1], [0, 0, 1, 1], [], []>} : vector<16x384xbf16>, vector<384x128xbf16>, vector<16x128xf32> -> vector<16x128xf32>
    %c0_11 = arith.constant 0 : index
    %c0_12 = arith.constant 0 : index
    %35 = vector.load %arg2[%c0_11, %c0_12] : memref<1x128xf32, #tpu.memory_space<vmem>>, vector<1x128xf32>
    %36 = vector.broadcast %35 : vector<1x128xf32> to vector<16x128xf32>
    %37 = arith.addf %34, %36 : vector<16x128xf32>
    %cst_13 = arith.constant 0.000000e+00 : f32
    %38 = vector.broadcast %cst_13 : f32 to vector<16x128xf32>
    %39 = arith.maximumf %37, %38 : vector<16x128xf32>
    %c0_14 = arith.constant 0 : index
    %c0_15 = arith.constant 0 : index
    %40 = vector.load %arg3[%c0_14, %c0_15] : memref<384x128xbf16, #tpu.memory_space<vmem>>, vector<384x128xbf16>
    %41 = vector.extract_strided_slice %39 {offsets = [0, 0], sizes = [8, 128], strides = [1, 1]} : vector<16x128xf32> to vector<8x128xf32>
    %c1_i32_16 = arith.constant 1 : i32
    %42 = tpu.dynamic_rotate %41 by %c1_i32_16 dim 0 : vector<8x128xf32>, i32 -> vector<8x128xf32>
    %cst_17 = arith.constant 0.000000e+00 : f32
    %43 = vector.shape_cast %4 : vector<8x1xi1> to vector<8x1xi1>
    %44 = vector.broadcast %43 : vector<8x1xi1> to vector<8x128xi1>
    %45 = vector.broadcast %cst_17 : f32 to vector<8x128xf32>
    %46 = arith.select %44, %45, %42 : vector<8x128xi1>, vector<8x128xf32>
    %c7_i32_18 = arith.constant 7 : i32
    %47 = tpu.dynamic_rotate %41 by %c7_i32_18 dim 0 : vector<8x128xf32>, i32 -> vector<8x128xf32>
    %cst_19 = arith.constant 0.000000e+00 : f32
    %48 = vector.shape_cast %6 : vector<8x1xi1> to vector<8x1xi1>
    %49 = vector.broadcast %48 : vector<8x1xi1> to vector<8x128xi1>
    %50 = vector.broadcast %cst_19 : f32 to vector<8x128xf32>
    %51 = arith.select %49, %50, %47 : vector<8x128xi1>, vector<8x128xf32>
    %52 = tpu.concatenate %46, %41, %51 in 1 : vector<8x128xf32>, vector<8x128xf32>, vector<8x128xf32> -> vector<8x384xf32>
    %53 = vector.extract_strided_slice %39 {offsets = [8, 0], sizes = [8, 128], strides = [1, 1]} : vector<16x128xf32> to vector<8x128xf32>
    %c1_i32_20 = arith.constant 1 : i32
    %54 = tpu.dynamic_rotate %53 by %c1_i32_20 dim 0 : vector<8x128xf32>, i32 -> vector<8x128xf32>
    %cst_21 = arith.constant 0.000000e+00 : f32
    %55 = vector.shape_cast %4 : vector<8x1xi1> to vector<8x1xi1>
    %56 = vector.broadcast %55 : vector<8x1xi1> to vector<8x128xi1>
    %57 = vector.broadcast %cst_21 : f32 to vector<8x128xf32>
    %58 = arith.select %56, %57, %54 : vector<8x128xi1>, vector<8x128xf32>
    %c7_i32_22 = arith.constant 7 : i32
    %59 = tpu.dynamic_rotate %53 by %c7_i32_22 dim 0 : vector<8x128xf32>, i32 -> vector<8x128xf32>
    %cst_23 = arith.constant 0.000000e+00 : f32
    %60 = vector.shape_cast %6 : vector<8x1xi1> to vector<8x1xi1>
    %61 = vector.broadcast %60 : vector<8x1xi1> to vector<8x128xi1>
    %62 = vector.broadcast %cst_23 : f32 to vector<8x128xf32>
    %63 = arith.select %61, %62, %59 : vector<8x128xi1>, vector<8x128xf32>
    %64 = tpu.concatenate %58, %53, %63 in 1 : vector<8x128xf32>, vector<8x128xf32>, vector<8x128xf32> -> vector<8x384xf32>
    %65 = tpu.concatenate %52, %64 in 0 : vector<8x384xf32>, vector<8x384xf32> -> vector<16x384xf32>
    %66 = arith.truncf %65 : vector<16x384xf32> to vector<16x384xbf16>
    %cst_24 = arith.constant dense<0.000000e+00> : vector<16x128xf32>
    %67 = tpu.matmul %66, %40, %cst_24 {dimension_numbers = #tpu.dot_dimension_numbers<[1], [0], [0], [1], [0, 0, 1, 1], [], []>} : vector<16x384xbf16>, vector<384x128xbf16>, vector<16x128xf32> -> vector<16x128xf32>
    %c0_25 = arith.constant 0 : index
    %c0_26 = arith.constant 0 : index
    %68 = vector.load %arg4[%c0_25, %c0_26] : memref<1x128xf32, #tpu.memory_space<vmem>>, vector<1x128xf32>
    %69 = vector.broadcast %68 : vector<1x128xf32> to vector<16x128xf32>
    %70 = arith.addf %67, %69 : vector<16x128xf32>
    %71 = vector.shape_cast %70 : vector<16x128xf32> to vector<2x8x128xf32>
    %cst_27 = arith.constant dense<0.000000e+00> : vector<2x128xf32>
    %72 = vector.multi_reduction <add>, %71, %cst_27 [1] : vector<2x8x128xf32> to vector<2x128xf32>
    %cst_28 = arith.constant 8.000000e+00 : f32
    %73 = vector.broadcast %cst_28 : f32 to vector<2x128xf32>
    %74 = arith.divf %72, %73 : vector<2x128xf32>
    %75 = arith.truncf %74 : vector<2x128xf32> to vector<2x128xbf16>
    %c0_29 = arith.constant 0 : index
    %c0_30 = arith.constant 0 : index
    %76 = vector.load %arg5[%c0_29, %c0_30] : memref<128x128xbf16, #tpu.memory_space<vmem>>, vector<128x128xbf16>
    %cst_31 = arith.constant dense<0.000000e+00> : vector<2x128xf32>
    %77 = tpu.matmul %75, %76, %cst_31 {dimension_numbers = #tpu.dot_dimension_numbers<[1], [0], [0], [1], [0, 0, 1, 1], [], []>} : vector<2x128xbf16>, vector<128x128xbf16>, vector<2x128xf32> -> vector<2x128xf32>
    %cst_32 = arith.constant 0.000000e+00 : f32
    %78 = vector.broadcast %cst_32 : f32 to vector<2x128xf32>
    %79 = arith.maximumf %77, %78 : vector<2x128xf32>
    %80 = arith.truncf %79 : vector<2x128xf32> to vector<2x128xbf16>
    %c0_33 = arith.constant 0 : index
    %c0_34 = arith.constant 0 : index
    %81 = vector.load %arg6[%c0_33, %c0_34] : memref<128x128xbf16, #tpu.memory_space<vmem>>, vector<128x128xbf16>
    %cst_35 = arith.constant dense<0.000000e+00> : vector<2x128xf32>
    %82 = tpu.matmul %80, %81, %cst_35 {dimension_numbers = #tpu.dot_dimension_numbers<[1], [0], [0], [1], [0, 0, 1, 1], [], []>} : vector<2x128xbf16>, vector<128x128xbf16>, vector<2x128xf32> -> vector<2x128xf32>
    %83 = arith.negf %82 : vector<2x128xf32>
    %84 = math.exp %83 : vector<2x128xf32>
    %cst_36 = arith.constant 1.000000e+00 : f32
    %85 = vector.broadcast %cst_36 : f32 to vector<2x128xf32>
    %86 = arith.addf %85, %84 : vector<2x128xf32>
    %87 = arith.divf %85, %86 : vector<2x128xf32>
    %88 = vector.shape_cast %87 : vector<2x128xf32> to vector<2x1x128xf32>
    %89 = vector.broadcast %88 : vector<2x1x128xf32> to vector<2x8x128xf32>
    %90 = arith.mulf %71, %89 : vector<2x8x128xf32>
    %91 = arith.addf %90, %0 : vector<2x8x128xf32>
    %cst_37 = arith.constant 0.000000e+00 : f32
    %92 = vector.broadcast %cst_37 : f32 to vector<2x8x128xf32>
    %93 = arith.maximumf %91, %92 : vector<2x8x128xf32>
    %c0_38 = arith.constant 0 : index
    %c0_39 = arith.constant 0 : index
    %c0_40 = arith.constant 0 : index
    %94 = vector.load %arg7[%c0_38, %c0_39, %c0_40] : memref<2x8x128xf32, #tpu.memory_space<vmem>>, vector<2x8x128xf32>
    tpu.vector_store %arg7[%c0_38, %c0_39, %c0_40], %93 {strides = array<i32>} : memref<2x8x128xf32, #tpu.memory_space<vmem>>, vector<2x8x128xf32>,
    return
  }
}

</mosaic_0001>

<llo_original>
// kernel: se_basic_block.1
$region0: #{se_basic_block.1}
  #allocation0 [shape = 'u32[]', space=smem, size = 0x4, offset = 0x4, fixed_abs, tag = 'smem constant byte address 0x4 - core index']
  #allocation1 [shape = 'u32[72,128]{1,0:T(1,128)}', space=vmem, size = 0x9000, scoped, tag = 'internal scratch']
  %s0 = inlined_call_operand.vmem [shape: f32[2,8,128], index: 0, kind: input, shape index: {}]
  %s1 = inlined_call_operand.hbm [shape: bf16[384,128], index: 1, kind: input, shape index: {}]
  %s2 = inlined_call_operand.vmem [shape: f32[1,128], index: 2, kind: input, shape index: {}]
  %s3 = inlined_call_operand.hbm [shape: bf16[384,128], index: 3, kind: input, shape index: {}]
  %s4 = inlined_call_operand.vmem [shape: f32[1,128], index: 4, kind: input, shape index: {}]
  %s5 = inlined_call_operand.vmem [shape: bf16[128,128], index: 5, kind: input, shape index: {}]
  %s6 = inlined_call_operand.vmem [shape: bf16[128,128], index: 6, kind: input, shape index: {}]
  %s7 = inlined_call_operand.vmem [shape: f32[2,8,128], index: 7, kind: output, shape index: {}]
  %s8 = sld [smem:[#allocation0]]
  $region46: #{se_basic_block.1} parent=0
    _
  %s10 = ssub.s32 1, %s8
  %s11 = scalar_select 0, %s10, %s8
  $region1: #{se_basic_block.1} parent=0
    #allocation2 [shape = 'u8[98304]{0}', space=vmem, size = 0x18000, scoped, tag = 'input window, operand 1, single buffered']
    #allocation3 [shape = 's32[1]{0}', space=sflag, size = 0x4, scoped, tag = 'scoped memory for se_basic_block.1']
    #allocation4 [shape = 'u8[98304]{0}', space=vmem, size = 0x18000, scoped, tag = 'input window, operand 3, single buffered']
    #allocation5 [shape = 's32[1]{0}', space=sflag, size = 0x4, scoped, tag = 'scoped memory for se_basic_block.1']
    %12 = vsyncpa [#allocation3], 0
    %13 = vsyncpa [#allocation5], 0
    // Predicated region
    $region2: #{se_basic_block.1} parent=1 // pred_check
      _
    $region3: #{se_basic_block.1} parent=1 // pred_check_branch
      %15 = sbr.rel (0) target = $region5
    $region4: #{se_basic_block.1} parent=1 // pred_region
      _
    $region5: #{se_basic_block.1} parent=1 // pred_fallthru
      _
    // Predicated region
    $region6: #{se_basic_block.1} parent=1 // pred_check
      _
    $region7: #{se_basic_block.1} parent=1 // pred_check_branch
      %17 = sbr.rel (0) target = $region9
    $region8: #{se_basic_block.1} parent=1 // pred_region
      %19 = vsyncadd [#allocation3], 0
      %s20 = sshll.u32 %s1, 4
      %s21 = int_to_ptr.hbm [resolvable:$true] %s20
      %s22 = sshll.u32 [#allocation2], 4
      %s23 = int_to_ptr.vmem [resolvable:$true] %s22
      %28 = dma.hbm_to_vmem [thread:$0]  %s21, 3072, %s23, [#allocation3], 64, 64, 4
    $region9: #{se_basic_block.1} parent=1 // pred_fallthru
      _
    // Predicated region
    $region10: #{se_basic_block.1} parent=1 // pred_check
      _
    $region11: #{se_basic_block.1} parent=1 // pred_check_branch
      %30 = sbr.rel (0) target = $region13
    $region12: #{se_basic_block.1} parent=1 // pred_region
      _
    $region13: #{se_basic_block.1} parent=1 // pred_fallthru
      _
    // Predicated region
    $region14: #{se_basic_block.1} parent=1 // pred_check
      _
    $region15: #{se_basic_block.1} parent=1 // pred_check_branch
      %32 = sbr.rel (0) target = $region17
    $region16: #{se_basic_block.1} parent=1 // pred_region
      %34 = vsyncadd [#allocation5], 0
      %s35 = sshll.u32 %s3, 4
      %s36 = int_to_ptr.hbm [resolvable:$true] %s35
      %s37 = sshll.u32 [#allocation4], 4
      %s38 = int_to_ptr.vmem [resolvable:$true] %s37
      %43 = dma.hbm_to_vmem [thread:$0]  %s36, 3072, %s38, [#allocation5], 64, 64, 4
    $region17: #{se_basic_block.1} parent=1 // pred_fallthru
      _
    // Predicated region
    $region18: #{se_basic_block.1} parent=1 // pred_check
      _
    $region19: #{se_basic_block.1} parent=1 // pred_check_branch
      %45 = sbr.rel (0) target = $region21
    $region20: #{se_basic_block.1} parent=1 // pred_region
      _
    $region21: #{se_basic_block.1} parent=1 // pred_fallthru
      _
    // Predicated region
    $region22: #{se_basic_block.1} parent=1 // pred_check
      _
    $region23: #{se_basic_block.1} parent=1 // pred_check_branch
      %47 = sbr.rel (0) target = $region25
    $region24: #{se_basic_block.1} parent=1 // pred_region
      _
    $region25: #{se_basic_block.1} parent=1 // pred_fallthru
      _
    // Predicated region
    $region26: #{se_basic_block.1} parent=1 // pred_check
      _
    $region27: #{se_basic_block.1} parent=1 // pred_check_branch
      %49 = sbr.rel (0) target = $region29
    $region28: #{se_basic_block.1} parent=1 // pred_region
      _
    $region29: #{se_basic_block.1} parent=1 // pred_fallthru
      _
    // Predicated region
    $region30: #{se_basic_block.1} parent=1 // pred_check
      _
    $region31: #{se_basic_block.1} parent=1 // pred_check_branch
      %51 = sbr.rel (0) target = $region33
    $region32: #{se_basic_block.1} parent=1 // pred_region
      %53 = dma.done [#allocation3], 3072
    $region33: #{se_basic_block.1} parent=1 // pred_fallthru
      _
    // Predicated region
    $region34: #{se_basic_block.1} parent=1 // pred_check
      _
    $region35: #{se_basic_block.1} parent=1 // pred_check_branch
      %55 = sbr.rel (0) target = $region37
    $region36: #{se_basic_block.1} parent=1 // pred_region
      %57 = dma.done [#allocation5], 3072
    $region37: #{se_basic_block.1} parent=1 // pred_fallthru
      _
    %v58 = vld [vmem:[%s0] sm:$0xff]
    %v59 = vld [vmem:[%s0 + $0x8] sm:$0xff]
    %v60 = vlaneseq
    %v61 = vshrl.u32 %v60, 7
    %vm62 = vcmp.eq.s32.totalorder %v61, 0
    %vm63 = vcmp.eq.s32.totalorder %v61, 7
    %v64 = vld [vmem:[#allocation2] sm:$0xf]
    %v65 = vld [vmem:[#allocation2 + $0x4] sm:$0xf]
    %v66 = vld [vmem:[#allocation2 + $0x8] sm:$0xf]
    %v67 = vld [vmem:[#allocation2 + $0xc] sm:$0xf]
    %v68 = vld [vmem:[#allocation2 + $0x10] sm:$0xf]
    %v69 = vld [vmem:[#allocation2 + $0x14] sm:$0xf]
    %v70 = vld [vmem:[#allocation2 + $0x18] sm:$0xf]
    %v71 = vld [vmem:[#allocation2 + $0x1c] sm:$0xf]
    %v72 = vld [vmem:[#allocation2 + $0x20] sm:$0xf]
    %v73 = vld [vmem:[#allocation2 + $0x24] sm:$0xf]
    %v74 = vld [vmem:[#allocation2 + $0x28] sm:$0xf]
    %v75 = vld [vmem:[#allocation2 + $0x2c] sm:$0xf]
    %v76 = vld [vmem:[#allocation2 + $0x30] sm:$0xf]
    %v77 = vld [vmem:[#allocation2 + $0x34] sm:$0xf]
    %v78 = vld [vmem:[#allocation2 + $0x38] sm:$0xf]
    %v79 = vld [vmem:[#allocation2 + $0x3c] sm:$0xf]
    %v80 = vld [vmem:[#allocation2 + $0x40] sm:$0xf]
    %v81 = vld [vmem:[#allocation2 + $0x44] sm:$0xf]
    %v82 = vld [vmem:[#allocation2 + $0x48] sm:$0xf]
    %v83 = vld [vmem:[#allocation2 + $0x4c] sm:$0xf]
    %v84 = vld [vmem:[#allocation2 + $0x50] sm:$0xf]
    %v85 = vld [vmem:[#allocation2 + $0x54] sm:$0xf]
    %v86 = vld [vmem:[#allocation2 + $0x58] sm:$0xf]
    %v87 = vld [vmem:[#allocation2 + $0x5c] sm:$0xf]
    %v88 = vld [vmem:[#allocation2 + $0x60] sm:$0xf]
    %v89 = vld [vmem:[#allocation2 + $0x64] sm:$0xf]
    %v90 = vld [vmem:[#allocation2 + $0x68] sm:$0xf]
    %v91 = vld [vmem:[#allocation2 + $0x6c] sm:$0xf]
    %v92 = vld [vmem:[#allocation2 + $0x70] sm:$0xf]
    %v93 = vld [vmem:[#allocation2 + $0x74] sm:$0xf]
    %v94 = vld [vmem:[#allocation2 + $0x78] sm:$0xf]
    %v95 = vld [vmem:[#allocation2 + $0x7c] sm:$0xf]
    %v96 = vld [vmem:[#allocation2 + $0x80] sm:$0xf]
    %v97 = vld [vmem:[#allocation2 + $0x84] sm:$0xf]
    %v98 = vld [vmem:[#allocation2 + $0x88] sm:$0xf]
    %v99 = vld [vmem:[#allocation2 + $0x8c] sm:$0xf]
    %v100 = vld [vmem:[#allocation2 + $0x90] sm:$0xf]
    %v101 = vld [vmem:[#allocation2 + $0x94] sm:$0xf]
    %v102 = vld [vmem:[#allocation2 + $0x98] sm:$0xf]
    %v103 = vld [vmem:[#allocation2 + $0x9c] sm:$0xf]
    %v104 = vld [vmem:[#allocation2 + $0xa0] sm:$0xf]
    %v105 = vld [vmem:[#allocation2 + $0xa4] sm:$0xf]
    %v106 = vld [vmem:[#allocation2 + $0xa8] sm:$0xf]
    %v107 = vld [vmem:[#allocation2 + $0xac] sm:$0xf]
    %v108 = vld [vmem:[#allocation2 + $0xb0] sm:$0xf]
    %v109 = vld [vmem:[#allocation2 + $0xb4] sm:$0xf]
    %v110 = vld [vmem:[#allocation2 + $0xb8] sm:$0xf]
    %v111 = vld [vmem:[#allocation2 + $0xbc] sm:$0xf]
    %v112 = vrot.slane %v58, 7
    %v113 = vsel %vm62, 1, 0
    %vm114 = vcmp.eq.s32.totalorder %v113, 1
    %v115 = vsel %vm114, 0.0, %v112
    %v116 = vrot.slane %v58, 1
    %v117 = vsel %vm63, 1, 0
    %vm118 = vcmp.eq.s32.totalorder %v117, 1
    %v119 = vsel %vm118, 0.0, %v116
    %v120 = vrot.slane %v59, 7
    %v121 = vsel %vm114, 0.0, %v120
    %v122 = vrot.slane %v59, 1
    %v123 = vsel %vm118, 0.0, %v122
    %v124 = vpack.c.bf16 %v121, %v115
    %v125 = vpack.c.bf16 %v59, %v58
    %v126 = vpack.c.bf16 %v123, %v119
    %v127 = vld [vmem:[%s2] sm:$0x1]
    %v129 = vperm.slane %v127, 0
    %v179 = vunpack.c.l.b16 %v64
    %v180 = vunpack.c.l.b16 %v65
    %v181 = vunpack.c.l.b16 %v66
    %v182 = vunpack.c.l.b16 %v67
    %v183 = vunpack.c.l.b16 %v68
    %v184 = vunpack.c.l.b16 %v69
    %v185 = vunpack.c.l.b16 %v70
    %v186 = vunpack.c.l.b16 %v71
    %v187 = vunpack.c.l.b16 %v72
    %v188 = vunpack.c.l.b16 %v73
    %v189 = vunpack.c.l.b16 %v74
    %v190 = vunpack.c.l.b16 %v75
    %v191 = vunpack.c.l.b16 %v76
    %v192 = vunpack.c.l.b16 %v77
    %v193 = vunpack.c.l.b16 %v78
    %v194 = vunpack.c.l.b16 %v79
    %v195 = vunpack.c.l.b16 %v80
    %v196 = vunpack.c.l.b16 %v81
    %v197 = vunpack.c.l.b16 %v82
    %v198 = vunpack.c.l.b16 %v83
    %v199 = vunpack.c.l.b16 %v84
    %v200 = vunpack.c.l.b16 %v85
    %v201 = vunpack.c.l.b16 %v86
    %v202 = vunpack.c.l.b16 %v87
    %v203 = vunpack.c.l.b16 %v88
    %v204 = vunpack.c.l.b16 %v89
    %v205 = vunpack.c.l.b16 %v90
    %v206 = vunpack.c.l.b16 %v91
    %v207 = vunpack.c.l.b16 %v92
    %v208 = vunpack.c.l.b16 %v93
    %v209 = vunpack.c.l.b16 %v94
    %v210 = vunpack.c.l.b16 %v95
    %v211 = vunpack.c.l.b16 %v96
    %v212 = vunpack.c.l.b16 %v97
    %v213 = vunpack.c.l.b16 %v98
    %v214 = vunpack.c.l.b16 %v99
    %v215 = vunpack.c.l.b16 %v100
    %v216 = vunpack.c.l.b16 %v101
    %v217 = vunpack.c.l.b16 %v102
    %v218 = vunpack.c.l.b16 %v103
    %v219 = vunpack.c.l.b16 %v104
    %v220 = vunpack.c.l.b16 %v105
    %v221 = vunpack.c.l.b16 %v106
    %v222 = vunpack.c.l.b16 %v107
    %v223 = vunpack.c.l.b16 %v108
    %v224 = vunpack.c.l.b16 %v109
    %v225 = vunpack.c.l.b16 %v110
    %v226 = vunpack.c.l.b16 %v111
    %v227 = vpack.c.b16 %v180, %v179
    %v228 = vpack.c.b16 %v182, %v181
    %v229 = vpack.c.b16 %v184, %v183
    %v230 = vpack.c.b16 %v186, %v185
    %v231 = vpack.c.b16 %v188, %v187
    %v232 = vpack.c.b16 %v190, %v189
    %v233 = vpack.c.b16 %v192, %v191
    %v234 = vpack.c.b16 %v194, %v193
    %v235 = vpack.c.b16 %v196, %v195
    %v236 = vpack.c.b16 %v198, %v197
    %v237 = vpack.c.b16 %v200, %v199
    %v238 = vpack.c.b16 %v202, %v201
    %v239 = vpack.c.b16 %v204, %v203
    %v240 = vpack.c.b16 %v206, %v205
    %v241 = vpack.c.b16 %v208, %v207
    %v242 = vpack.c.b16 %v210, %v209
    %v243 = vpack.c.b16 %v212, %v211
    %v244 = vpack.c.b16 %v214, %v213
    %v245 = vpack.c.b16 %v216, %v215
    %v246 = vpack.c.b16 %v218, %v217
    %v247 = vpack.c.b16 %v220, %v219
    %v248 = vpack.c.b16 %v222, %v221
    %v249 = vpack.c.b16 %v224, %v223
    %v250 = vpack.c.b16 %v226, %v225
    %275 = vmatpush.bf16.msra.mxu0 %v234
    %276 = vmatpush.bf16.msra.mxu0 %v233
    %277 = vmatpush.bf16.msra.mxu0 %v232
    %278 = vmatpush.bf16.msra.mxu0 %v231
    %279 = vmatpush.bf16.msra.mxu0 %v230
    %280 = vmatpush.bf16.msra.mxu0 %v229
    %281 = vmatpush.bf16.msra.mxu0 %v228
    %282 = vmatpush.bf16.msra.mxu0 %v227
    %283 = vmatmul.bf16.gmra.mxu0 %v124
    %v284 = vpop.f32.mrf.mxu0
    %v285 = vadd.f32 %v129, %v284
    %v286 = vpop.f32.mrf.mxu0
    %v287 = vadd.f32 %v129, %v286
    %288 = vdwg.mxu0
    %289 = vmatpush.bf16.msra.mxu0 %v242
    %290 = vmatpush.bf16.msra.mxu0 %v241
    %291 = vmatpush.bf16.msra.mxu0 %v240
    %292 = vmatpush.bf16.msra.mxu0 %v239
    %293 = vmatpush.bf16.msra.mxu0 %v238
    %294 = vmatpush.bf16.msra.mxu0 %v237
    %295 = vmatpush.bf16.msra.mxu0 %v236
    %296 = vmatpush.bf16.msra.mxu0 %v235
    %297 = vmatmul.bf16.gmra.mxu0 %v125
    %v298 = vpop.f32.mrf.mxu0
    %v299 = vadd.f32 %v285, %v298
    %v300 = vpop.f32.mrf.mxu0
    %v301 = vadd.f32 %v287, %v300
    %302 = vdwg.mxu0
    %303 = vmatpush.bf16.msra.mxu0 %v250
    %304 = vmatpush.bf16.msra.mxu0 %v249
    %305 = vmatpush.bf16.msra.mxu0 %v248
    %306 = vmatpush.bf16.msra.mxu0 %v247
    %307 = vmatpush.bf16.msra.mxu0 %v246
    %308 = vmatpush.bf16.msra.mxu0 %v245
    %309 = vmatpush.bf16.msra.mxu0 %v244
    %310 = vmatpush.bf16.msra.mxu0 %v243
    %311 = vmatmul.bf16.gmra.mxu0 %v126
    %v312 = vpop.f32.mrf.mxu0
    %v313 = vadd.f32 %v299, %v312
    %v314 = vpop.f32.mrf.mxu0
    %v315 = vadd.f32 %v301, %v314
    %316 = vdwg.mxu0
    %v317 = vmax.f32 %v313, 0.0
    %v318 = vmax.f32 %v315, 0.0
    %v319 = vld [vmem:[#allocation4] sm:$0xf]
    %v320 = vld [vmem:[#allocation4 + $0x4] sm:$0xf]
    %v321 = vld [vmem:[#allocation4 + $0x8] sm:$0xf]
    %v322 = vld [vmem:[#allocation4 + $0xc] sm:$0xf]
    %v323 = vld [vmem:[#allocation4 + $0x10] sm:$0xf]
    %v324 = vld [vmem:[#allocation4 + $0x14] sm:$0xf]
    %v325 = vld [vmem:[#allocation4 + $0x18] sm:$0xf]
    %v326 = vld [vmem:[#allocation4 + $0x1c] sm:$0xf]
    %v327 = vld [vmem:[#allocation4 + $0x20] sm:$0xf]
    %v328 = vld [vmem:[#allocation4 + $0x24] sm:$0xf]
    %v329 = vld [vmem:[#allocation4 + $0x28] sm:$0xf]
    %v330 = vld [vmem:[#allocation4 + $0x2c] sm:$0xf]
    %v331 = vld [vmem:[#allocation4 + $0x30] sm:$0xf]
    %v332 = vld [vmem:[#allocation4 + $0x34] sm:$0xf]
    %v333 = vld [vmem:[#allocation4 + $0x38] sm:$0xf]
    %v334 = vld [vmem:[#allocation4 + $0x3c] sm:$0xf]
    %v335 = vld [vmem:[#allocation4 + $0x40] sm:$0xf]
    %v336 = vld [vmem:[#allocation4 + $0x44] sm:$0xf]
    %v337 = vld [vmem:[#allocation4 + $0x48] sm:$0xf]
    %v338 = vld [vmem:[#allocation4 + $0x4c] sm:$0xf]
    %v339 = vld [vmem:[#allocation4 + $0x50] sm:$0xf]
    %v340 = vld [vmem:[#allocation4 + $0x54] sm:$0xf]
    %v341 = vld [vmem:[#allocation4 + $0x58] sm:$0xf]
    %v342 = vld [vmem:[#allocation4 + $0x5c] sm:$0xf]
    %v343 = vld [vmem:[#allocation4 + $0x60] sm:$0xf]
    %v344 = vld [vmem:[#allocation4 + $0x64] sm:$0xf]
    %v345 = vld [vmem:[#allocation4 + $0x68] sm:$0xf]
    %v346 = vld [vmem:[#allocation4 + $0x6c] sm:$0xf]
    %v347 = vld [vmem:[#allocation4 + $0x70] sm:$0xf]
    %v348 = vld [vmem:[#allocation4 + $0x74] sm:$0xf]
    %v349 = vld [vmem:[#allocation4 + $0x78] sm:$0xf]
    %v350 = vld [vmem:[#allocation4 + $0x7c] sm:$0xf]
    %v351 = vld [vmem:[#allocation4 + $0x80] sm:$0xf]
    %v352 = vld [vmem:[#allocation4 + $0x84] sm:$0xf]
    %v353 = vld [vmem:[#allocation4 + $0x88] sm:$0xf]
    %v354 = vld [vmem:[#allocation4 + $0x8c] sm:$0xf]
    %v355 = vld [vmem:[#allocation4 + $0x90] sm:$0xf]
    %v356 = vld [vmem:[#allocation4 + $0x94] sm:$0xf]
    %v357 = vld [vmem:[#allocation4 + $0x98] sm:$0xf]
    %v358 = vld [vmem:[#allocation4 + $0x9c] sm:$0xf]
    %v359 = vld [vmem:[#allocation4 + $0xa0] sm:$0xf]
    %v360 = vld [vmem:[#allocation4 + $0xa4] sm:$0xf]
    %v361 = vld [vmem:[#allocation4 + $0xa8] sm:$0xf]
    %v362 = vld [vmem:[#allocation4 + $0xac] sm:$0xf]
    %v363 = vld [vmem:[#allocation4 + $0xb0] sm:$0xf]
    %v364 = vld [vmem:[#allocation4 + $0xb4] sm:$0xf]
    %v365 = vld [vmem:[#allocation4 + $0xb8] sm:$0xf]
    %v366 = vld [vmem:[#allocation4 + $0xbc] sm:$0xf]
    %v367 = vrot.slane %v317, 7
    %v368 = vsel %vm114, 0.0, %v367
    %v369 = vrot.slane %v317, 1
    %v370 = vsel %vm118, 0.0, %v369
    %v371 = vrot.slane %v318, 7
    %v372 = vsel %vm114, 0.0, %v371
    %v373 = vrot.slane %v318, 1
    %v374 = vsel %vm118, 0.0, %v373
    %v375 = vpack.c.bf16 %v372, %v368
    %v376 = vpack.c.bf16 %v318, %v317
    %v377 = vpack.c.bf16 %v374, %v370
    %v378 = vld [vmem:[%s4] sm:$0x1]
    %v380 = vperm.slane %v378, 0
    %v430 = vunpack.c.l.b16 %v319
    %v431 = vunpack.c.l.b16 %v320
    %v432 = vunpack.c.l.b16 %v321
    %v433 = vunpack.c.l.b16 %v322
    %v434 = vunpack.c.l.b16 %v323
    %v435 = vunpack.c.l.b16 %v324
    %v436 = vunpack.c.l.b16 %v325
    %v437 = vunpack.c.l.b16 %v326
    %v438 = vunpack.c.l.b16 %v327
    %v439 = vunpack.c.l.b16 %v328
    %v440 = vunpack.c.l.b16 %v329
    %v441 = vunpack.c.l.b16 %v330
    %v442 = vunpack.c.l.b16 %v331
    %v443 = vunpack.c.l.b16 %v332
    %v444 = vunpack.c.l.b16 %v333
    %v445 = vunpack.c.l.b16 %v334
    %v446 = vunpack.c.l.b16 %v335
    %v447 = vunpack.c.l.b16 %v336
    %v448 = vunpack.c.l.b16 %v337
    %v449 = vunpack.c.l.b16 %v338
    %v450 = vunpack.c.l.b16 %v339
    %v451 = vunpack.c.l.b16 %v340
    %v452 = vunpack.c.l.b16 %v341
    %v453 = vunpack.c.l.b16 %v342
    %v454 = vunpack.c.l.b16 %v343
    %v455 = vunpack.c.l.b16 %v344
    %v456 = vunpack.c.l.b16 %v345
    %v457 = vunpack.c.l.b16 %v346
    %v458 = vunpack.c.l.b16 %v347
    %v459 = vunpack.c.l.b16 %v348
    %v460 = vunpack.c.l.b16 %v349
    %v461 = vunpack.c.l.b16 %v350
    %v462 = vunpack.c.l.b16 %v351
    %v463 = vunpack.c.l.b16 %v352
    %v464 = vunpack.c.l.b16 %v353
    %v465 = vunpack.c.l.b16 %v354
    %v466 = vunpack.c.l.b16 %v355
    %v467 = vunpack.c.l.b16 %v356
    %v468 = vunpack.c.l.b16 %v357
    %v469 = vunpack.c.l.b16 %v358
    %v470 = vunpack.c.l.b16 %v359
    %v471 = vunpack.c.l.b16 %v360
    %v472 = vunpack.c.l.b16 %v361
    %v473 = vunpack.c.l.b16 %v362
    %v474 = vunpack.c.l.b16 %v363
    %v475 = vunpack.c.l.b16 %v364
    %v476 = vunpack.c.l.b16 %v365
    %v477 = vunpack.c.l.b16 %v366
    %v478 = vpack.c.b16 %v431, %v430
    %v479 = vpack.c.b16 %v433, %v432
    %v480 = vpack.c.b16 %v435, %v434
    %v481 = vpack.c.b16 %v437, %v436
    %v482 = vpack.c.b16 %v439, %v438
    %v483 = vpack.c.b16 %v441, %v440
    %v484 = vpack.c.b16 %v443, %v442
    %v485 = vpack.c.b16 %v445, %v444
    %v486 = vpack.c.b16 %v447, %v446
    %v487 = vpack.c.b16 %v449, %v448
    %v488 = vpack.c.b16 %v451, %v450
    %v489 = vpack.c.b16 %v453, %v452
    %v490 = vpack.c.b16 %v455, %v454
    %v491 = vpack.c.b16 %v457, %v456
    %v492 = vpack.c.b16 %v459, %v458
    %v493 = vpack.c.b16 %v461, %v460
    %v494 = vpack.c.b16 %v463, %v462
    %v495 = vpack.c.b16 %v465, %v464
    %v496 = vpack.c.b16 %v467, %v466
    %v497 = vpack.c.b16 %v469, %v468
    %v498 = vpack.c.b16 %v471, %v470
    %v499 = vpack.c.b16 %v473, %v472
    %v500 = vpack.c.b16 %v475, %v474
    %v501 = vpack.c.b16 %v477, %v476
    %526 = vmatpush.bf16.msra.mxu0 %v485
    %527 = vmatpush.bf16.msra.mxu0 %v484
    %528 = vmatpush.bf16.msra.mxu0 %v483
    %529 = vmatpush.bf16.msra.mxu0 %v482
    %530 = vmatpush.bf16.msra.mxu0 %v481
    %531 = vmatpush.bf16.msra.mxu0 %v480
    %532 = vmatpush.bf16.msra.mxu0 %v479
    %533 = vmatpush.bf16.msra.mxu0 %v478
    %534 = vmatmul.bf16.gmra.mxu0 %v375
    %v535 = vpop.f32.mrf.mxu0
    %v536 = vadd.f32 %v380, %v535
    %v537 = vpop.f32.mrf.mxu0
    %v538 = vadd.f32 %v380, %v537
    %539 = vdwg.mxu0
    %540 = vmatpush.bf16.msra.mxu0 %v493
    %541 = vmatpush.bf16.msra.mxu0 %v492
    %542 = vmatpush.bf16.msra.mxu0 %v491
    %543 = vmatpush.bf16.msra.mxu0 %v490
    %544 = vmatpush.bf16.msra.mxu0 %v489
    %545 = vmatpush.bf16.msra.mxu0 %v488
    %546 = vmatpush.bf16.msra.mxu0 %v487
    %547 = vmatpush.bf16.msra.mxu0 %v486
    %548 = vmatmul.bf16.gmra.mxu0 %v376
    %v549 = vpop.f32.mrf.mxu0
    %v550 = vadd.f32 %v536, %v549
    %v551 = vpop.f32.mrf.mxu0
    %v552 = vadd.f32 %v538, %v551
    %553 = vdwg.mxu0
    %554 = vmatpush.bf16.msra.mxu0 %v501
    %555 = vmatpush.bf16.msra.mxu0 %v500
    %556 = vmatpush.bf16.msra.mxu0 %v499
    %557 = vmatpush.bf16.msra.mxu0 %v498
    %558 = vmatpush.bf16.msra.mxu0 %v497
    %559 = vmatpush.bf16.msra.mxu0 %v496
    %560 = vmatpush.bf16.msra.mxu0 %v495
    %561 = vmatpush.bf16.msra.mxu0 %v494
    %562 = vmatmul.bf16.gmra.mxu0 %v377
    %v563 = vpop.f32.mrf.mxu0
    %v564 = vadd.f32 %v550, %v563
    %v565 = vpop.f32.mrf.mxu0
    %v566 = vadd.f32 %v552, %v565
    %567 = vdwg.mxu0
    %v568 = vrot.slane %v564, 4
    %v569 = vadd.f32 %v564, %v568
    %v570 = vrot.slane %v569, 2
    %v571 = vadd.f32 %v569, %v570
    %v572 = vrot.slane %v571, 1
    %v573 = vadd.f32 %v571, %v572
    %v574 = vrot.slane %v566, 4
    %v575 = vadd.f32 %v566, %v574
    %v576 = vrot.slane %v575, 2
    %v577 = vadd.f32 %v575, %v576
    %v578 = vrot.slane %v577, 1
    %v579 = vadd.f32 %v577, %v578
    %v580 = vrcp.pop 8.0
    %v581 = vmul.f32 8.0, %v580
    %v582 = vsub.f32 1.0, %v581
    %v583 = vmul.f32 %v580, %v582
    %v584 = vadd.f32 %v580, %v583
    %vm585 = vweird.f32 %v580
    %v586 = vsel %vm585, %v580, %v584
    %v587 = vmul.f32 %v573, %v586
    %v588 = vmul.f32 %v579, %v586
    %v589 = vpack.c.bf16 %v587, %v587
    %v590 = vpack.c.bf16 %v588, %v588
    %v591 = vld [vmem:[%s5] sm:$0xf]
    %v592 = vld [vmem:[%s5 + $0x4] sm:$0xf]
    %v593 = vld [vmem:[%s5 + $0x8] sm:$0xf]
    %v594 = vld [vmem:[%s5 + $0xc] sm:$0xf]
    %v595 = vld [vmem:[%s5 + $0x10] sm:$0xf]
    %v596 = vld [vmem:[%s5 + $0x14] sm:$0xf]
    %v597 = vld [vmem:[%s5 + $0x18] sm:$0xf]
    %v598 = vld [vmem:[%s5 + $0x1c] sm:$0xf]
    %v599 = vld [vmem:[%s5 + $0x20] sm:$0xf]
    %v600 = vld [vmem:[%s5 + $0x24] sm:$0xf]
    %v601 = vld [vmem:[%s5 + $0x28] sm:$0xf]
    %v602 = vld [vmem:[%s5 + $0x2c] sm:$0xf]
    %v603 = vld [vmem:[%s5 + $0x30] sm:$0xf]
    %v604 = vld [vmem:[%s5 + $0x34] sm:$0xf]
    %v605 = vld [vmem:[%s5 + $0x38] sm:$0xf]
    %v606 = vld [vmem:[%s5 + $0x3c] sm:$0xf]
    %v609 = vunpack.c.l.b16 %v589
    %v610 = vunpack.c.l.b16 %v590
    %vm611 = vcmask 1041409
    %v612 = vsel %vm611, %v610, %v609
    %v613 = vpack.c.b16 %v612, %v612
    %v631 = vunpack.c.l.b16 %v591
    %v632 = vunpack.c.l.b16 %v592
    %v633 = vunpack.c.l.b16 %v593
    %v634 = vunpack.c.l.b16 %v594
    %v635 = vunpack.c.l.b16 %v595
    %v636 = vunpack.c.l.b16 %v596
    %v637 = vunpack.c.l.b16 %v597
    %v638 = vunpack.c.l.b16 %v598
    %v639 = vunpack.c.l.b16 %v599
    %v640 = vunpack.c.l.b16 %v600
    %v641 = vunpack.c.l.b16 %v601
    %v642 = vunpack.c.l.b16 %v602
    %v643 = vunpack.c.l.b16 %v603
    %v644 = vunpack.c.l.b16 %v604
    %v645 = vunpack.c.l.b16 %v605
    %v646 = vunpack.c.l.b16 %v606
    %v647 = vpack.c.b16 %v632, %v631
    %v648 = vpack.c.b16 %v634, %v633
    %v649 = vpack.c.b16 %v636, %v635
    %v650 = vpack.c.b16 %v638, %v637
    %v651 = vpack.c.b16 %v640, %v639
    %v652 = vpack.c.b16 %v642, %v641
    %v653 = vpack.c.b16 %v644, %v643
    %v654 = vpack.c.b16 %v646, %v645
    %663 = vmatpush.bf16.msra.mxu0 %v654
    %664 = vmatpush.bf16.msra.mxu0 %v653
    %665 = vmatpush.bf16.msra.mxu0 %v652
    %666 = vmatpush.bf16.msra.mxu0 %v651
    %667 = vmatpush.bf16.msra.mxu0 %v650
    %668 = vmatpush.bf16.msra.mxu0 %v649
    %669 = vmatpush.bf16.msra.mxu0 %v648
    %670 = vmatpush.bf16.msra.mxu0 %v647
    %671 = vmatmul.bf16.gmra.mxu0 %v613
    %v672 = vpop.f32.mrf.mxu0
    %v673 = vadd.f32 0.0, %v672
    %v674 = vpop.f32.mrf.mxu0
    %675 = vdwg.mxu0
    %v676 = vmax.f32 %v673, 0.0
    %v677 = vpack.c.bf16 %v676, %v676
    %v678 = vld [vmem:[%s6] sm:$0xf]
    %v679 = vld [vmem:[%s6 + $0x4] sm:$0xf]
    %v680 = vld [vmem:[%s6 + $0x8] sm:$0xf]
    %v681 = vld [vmem:[%s6 + $0xc] sm:$0xf]
    %v682 = vld [vmem:[%s6 + $0x10] sm:$0xf]
    %v683 = vld [vmem:[%s6 + $0x14] sm:$0xf]
    %v684 = vld [vmem:[%s6 + $0x18] sm:$0xf]
    %v685 = vld [vmem:[%s6 + $0x1c] sm:$0xf]
    %v686 = vld [vmem:[%s6 + $0x20] sm:$0xf]
    %v687 = vld [vmem:[%s6 + $0x24] sm:$0xf]
    %v688 = vld [vmem:[%s6 + $0x28] sm:$0xf]
    %v689 = vld [vmem:[%s6 + $0x2c] sm:$0xf]
    %v690 = vld [vmem:[%s6 + $0x30] sm:$0xf]
    %v691 = vld [vmem:[%s6 + $0x34] sm:$0xf]
    %v692 = vld [vmem:[%s6 + $0x38] sm:$0xf]
    %v693 = vld [vmem:[%s6 + $0x3c] sm:$0xf]
    %v710 = vunpack.c.l.b16 %v678
    %v711 = vunpack.c.l.b16 %v679
    %v712 = vunpack.c.l.b16 %v680
    %v713 = vunpack.c.l.b16 %v681
    %v714 = vunpack.c.l.b16 %v682
    %v715 = vunpack.c.l.b16 %v683
    %v716 = vunpack.c.l.b16 %v684
    %v717 = vunpack.c.l.b16 %v685
    %v718 = vunpack.c.l.b16 %v686
    %v719 = vunpack.c.l.b16 %v687
    %v720 = vunpack.c.l.b16 %v688
    %v721 = vunpack.c.l.b16 %v689
    %v722 = vunpack.c.l.b16 %v690
    %v723 = vunpack.c.l.b16 %v691
    %v724 = vunpack.c.l.b16 %v692
    %v725 = vunpack.c.l.b16 %v693
    %v726 = vpack.c.b16 %v711, %v710
    %v727 = vpack.c.b16 %v713, %v712
    %v728 = vpack.c.b16 %v715, %v714
    %v729 = vpack.c.b16 %v717, %v716
    %v730 = vpack.c.b16 %v719, %v718
    %v731 = vpack.c.b16 %v721, %v720
    %v732 = vpack.c.b16 %v723, %v722
    %v733 = vpack.c.b16 %v725, %v724
    %742 = vmatpush.bf16.msra.mxu0 %v733
    %743 = vmatpush.bf16.msra.mxu0 %v732
    %744 = vmatpush.bf16.msra.mxu0 %v731
    %745 = vmatpush.bf16.msra.mxu0 %v730
    %746 = vmatpush.bf16.msra.mxu0 %v729
    %747 = vmatpush.bf16.msra.mxu0 %v728
    %748 = vmatpush.bf16.msra.mxu0 %v727
    %749 = vmatpush.bf16.msra.mxu0 %v726
    %750 = vmatmul.bf16.gmra.mxu0 %v677
    %v751 = vpop.f32.mrf.mxu0
    %v752 = vadd.f32 0.0, %v751
    %v753 = vpop.f32.mrf.mxu0
    %754 = vdwg.mxu0
    %v755 = vxor.u32 %v752, 2147483648
    %v756 = vmul.f32 %v755, 1.442695
    %v757 = vpow.pop %v756
    %v758 = vadd.f32 %v757, 1.0
    %v759 = vrcp.pop %v758
    %v760 = vmul.f32 %v758, %v759
    %v761 = vsub.f32 1.0, %v760
    %v762 = vmul.f32 %v759, %v761
    %v763 = vadd.f32 %v759, %v762
    %vm764 = vweird.f32 %v758
    %vm765 = vweird.f32 %v759
    %vm766 = vmor %vm764, %vm765
    %v767 = vsel %vm766, %v759, %v763
    %v768 = vand.u32 2147483647, %v758
    %vm769 = vcmp.eq.f32.partialorder %v768, 8.507059e+37
    %v770 = vand.u32 %v758, 2147483648
    %v771 = vor.u32 1.1754944e-38, %v770
    %v772 = vsel %vm769, %v771, %v767
    %v773 = vmul.f32 1.0, %v772
    %v775 = vrot.slane %v773, 1
    %v776 = vperm.slane %v773, 0
    %v777 = vperm.slane %v775, 0
    %v780 = vmul.f32 %v564, %v776
    %v781 = vmul.f32 %v566, %v777
    %v782 = vadd.f32 %v780, %v58
    %v783 = vadd.f32 %v781, %v59
    %v784 = vmax.f32 %v782, 0.0
    %v785 = vmax.f32 %v783, 0.0
    %786 = vst [vmem:[%s7] sm:$0xff] %v784
    %787 = vst [vmem:[%s7 + $0x8] sm:$0xff] %v785
    // Predicated region
    $region38: #{se_basic_block.1} parent=1 // pred_check
      _
    $region39: #{se_basic_block.1} parent=1 // pred_check_branch
      %789 = sbr.rel (0) target = $region41
    $region40: #{se_basic_block.1} parent=1 // pred_region
      _
    $region41: #{se_basic_block.1} parent=1 // pred_fallthru
      _
    // Predicated region
    $region42: #{se_basic_block.1} parent=1 // pred_check
      _
    $region43: #{se_basic_block.1} parent=1 // pred_check_branch
      %791 = sbr.rel (0) target = $region45
    $region44: #{se_basic_block.1} parent=1 // pred_region
      _
    $region45: #{se_basic_block.1} parent=1 // pred_fallthru
      _
    %792 = vsyncpa [#allocation3], 1
    %793 = vsyncpa [#allocation5], 1

</llo_original>
